<compile_context>
chip_gen: v7x
topology: tpu7x:2x2x1
jax: 0.10.0
libtpu: 0.0.40
codegen_flags: <defaults>
</compile_context>

<pallas_src>
import functools
import math

import jax
import jax.numpy as jnp
from jax.experimental import pallas as pl
from jax.experimental.pallas import tpu as pltpu


# ---------------------------------------------------------------------------
# pe buffer construction (identical math to the torch __init__)
# ---------------------------------------------------------------------------
def _build_pe(d_model: int, max_len: int = 5000, dtype=jnp.float32) -> jax.Array:
    position = jnp.arange(0, max_len, dtype=jnp.float32)[:, None]             # (max_len, 1)
    div_term = jnp.exp(
        jnp.arange(0, d_model, 2, dtype=jnp.float32) * (-math.log(10000.0) / d_model)
    )                                                                          # (d_model/2,)
    angles = position * div_term                                               # (max_len, d_model/2)
    pe = jnp.zeros((max_len, d_model), dtype=jnp.float32)
    pe = pe.at[:, 0::2].set(jnp.sin(angles))
    pe = pe.at[:, 1::2].set(jnp.cos(angles))
    # unsqueeze(0).transpose(0, 1) -> (max_len, 1, d_model)
    return pe[:, None, :].astype(dtype)


# ---------------------------------------------------------------------------
# kernels
# ---------------------------------------------------------------------------
def _pos_enc_kernel_flat(x_ref, pe_ref, o_ref, *, batch: int, d_model: int):
    # x_ref/o_ref: (ts, B*D); pe_ref: (ts, D). d_model % 128 == 0, so every
    # slice below is lane-aligned: pe stays in vregs, no VMEM temporary, and
    # the stores remain wide/unmasked. (Replaces the old jnp.tile broadcast.)
    pe_tile = pe_ref[...]
    for b in range(batch):                      # static unroll over batch copies
        lo = b * d_model
        o_ref[:, lo:lo + d_model] = x_ref[:, lo:lo + d_model] + pe_tile


def _pos_enc_kernel_3d(x_ref, pe_ref, o_ref):
    # x_ref/o_ref: (ts, B, td); pe_ref: (ts, 1, td) — broadcast over the batch
    # (sublane) axis; no materialized temporary.
    o_ref[...] = x_ref[...] + pe_ref[...]


# ---------------------------------------------------------------------------
# per-chip tuning & tile selection
# ---------------------------------------------------------------------------
def _chip_tuning():
    """Return (tile byte target, scoped-VMEM limit, min parallel grid steps)."""
    target, vmem_limit, min_steps = 2 << 20, 32 << 20, 1          # v5e-class default
    kind = ""
    try:
        kind = jax.devices()[0].device_kind.lower()
    except Exception:
        pass
    if "v7" in kind:
        # 3.2 TB/s HBM exposes the ~0.35 us per-step overhead at 2 MiB tiles;
        # 64 MiB VMEM per TensorCore; 2 TCs -> want >= 2 parallel grid steps.
        target, vmem_limit, min_steps = 7 << 20, 48 << 20, 2
    elif "v6" in kind:
        target, vmem_limit, min_steps = 4 << 20, 32 << 20, 1
    # Never request more scoped VMEM than the chip can reasonably give.
    try:
        cap = int(pltpu.get_tpu_info().vmem_capacity_bytes)
        vmem_limit = min(vmem_limit, max(cap // 2, cap - (16 << 20)))
    except Exception:
        pass
    return target, vmem_limit, min_steps


def _sublane_multiple(dtype) -> int:
    # Packed sub-32-bit dtypes stack rows per vreg: f32 -> 8, bf16 -> 16, int8 -> 32.
    return max(8, 32 // jnp.dtype(dtype).itemsize)


def _choose_tile_rows(seq_len: int, row_bytes: int, sub: int,
                      target_bytes: int, min_steps: int) -> int:
    """Pick a sublane-aligned tile height of roughly `target_bytes` per x tile."""
    ts = max(1, int(target_bytes) // max(int(row_bytes), 1))
    if min_steps > 1:                       # keep both v7x TensorCores busy
        ts = min(ts, max(1, pl.cdiv(seq_len, min_steps)))
    ts = min(ts, pl.cdiv(seq_len, sub) * sub)   # never more rows than needed
    ts = max(sub, (ts // sub) * sub)            # dtype-aware sublane alignment
    return int(ts)


# ---------------------------------------------------------------------------
# wrapper
# ---------------------------------------------------------------------------
def positional_encoding(x: jax.Array, pe: jax.Array) -> jax.Array:
    """x: (S, B, D), pe: (max_len, 1, D). Returns x + pe[:S] (broadcast over B)."""
    S, B, D = x.shape
    max_len = pe.shape[0]
    assert S <= max_len, "sequence length exceeds positional-encoding max_len"

    itemsize = jnp.dtype(x.dtype).itemsize
    sub = _sublane_multiple(x.dtype)
    target, vmem_limit, min_steps = _chip_tuning()

    flat_row_bytes = B * D * itemsize
    use_flat = (D % 128 == 0) and (sub * flat_row_bytes <= target)

    if use_flat:
        # ---- Path A: lane-dense flattened layout, static per-batch loop. ----
        x2 = x.reshape(S, B * D)                        # contiguous -> free reshape
        pe2 = pe.reshape(max_len, D).astype(x.dtype)    # one-time cast, rows picked by index_map
        ts = _choose_tile_rows(S, flat_row_bytes, sub, target, min_steps)
        kernel = functools.partial(_pos_enc_kernel_flat, batch=B, d_model=D)
        out2 = pl.pallas_call(
            kernel,
            out_shape=jax.ShapeDtypeStruct((S, B * D), x.dtype),
            grid_spec=pltpu.PrefetchScalarGridSpec(
                num_scalar_prefetch=0,
                grid=(pl.cdiv(S, ts),),
                in_specs=[
                    pl.BlockSpec((ts, B * D), lambda s: (s, 0)),   # x tile
                    pl.BlockSpec((ts, D), lambda s: (s, 0)),       # pe rows (same positions)
                ],
                out_specs=pl.BlockSpec((ts, B * D), lambda s: (s, 0)),
            ),
            compiler_params=pltpu.CompilerParams(
                dimension_semantics=("parallel",),
                vmem_limit_bytes=vmem_limit,
            ),
        )(x2, pe2)
        return out2.reshape(S, B, D)

    # ---- Path B: 3-D blocks, broadcast pe over the batch axis. ----
    pe3 = pe.astype(x.dtype)                            # (max_len, 1, D)
    b_pad = pl.cdiv(B, sub) * sub                       # VMEM sublane padding (estimate)
    d_pad = pl.cdiv(D, 128) * 128                       # VMEM lane padding (estimate)
    padded_row_bytes = b_pad * d_pad * itemsize

    if sub * padded_row_bytes > target:
        # Huge-row guard: also tile the d_model (lane) axis in multiples of 128.
        td = (int(target) // (sub * b_pad * itemsize) // 128) * 128
        td = min(max(td, 128), d_pad)
    else:
        td = D
    row_bytes = b_pad * (pl.cdiv(td, 128) * 128) * itemsize
    ts = _choose_tile_rows(S, row_bytes, sub, target, min_steps)

    return pl.pallas_call(
        _pos_enc_kernel_3d,
        out_shape=jax.ShapeDtypeStruct((S, B, D), x.dtype),
        grid_spec=pltpu.PrefetchScalarGridSpec(
            num_scalar_prefetch=0,
            grid=(pl.cdiv(S, ts), pl.cdiv(D, td)),
            in_specs=[
                pl.BlockSpec((ts, B, td), lambda s, d: (s, 0, d)),   # x tile
                pl.BlockSpec((ts, 1, td), lambda s, d: (s, 0, d)),   # pe rows
            ],
            out_specs=pl.BlockSpec((ts, B, td), lambda s, d: (s, 0, d)),
        ),
        compiler_params=pltpu.CompilerParams(
            dimension_semantics=("parallel", "parallel"),
            vmem_limit_bytes=vmem_limit,
        ),
    )(x, pe3)


if __name__ == "__main__":
    key = jax.random.PRNGKey(0)

    # Case 1: small shapes consistent with the module (seq=8, batch=2, d_model=32)
    # -> exercises the 3-D broadcast path (d_model not a multiple of 128).
    S, B, D = 8, 2, 32
    MAX_LEN = 64
    x = jax.random.normal(key, (S, B, D), dtype=jnp.float32)
    pe = _build_pe(D, max_len=MAX_LEN, dtype=jnp.float32)
    out = jax.block_until_ready(positional_encoding(x, pe))
    ref = x + pe[:S]
    assert out.shape == (S, B, D)
    assert jnp.allclose(out, ref, atol=1e-6), "mismatch vs reference (3-D path)"

    # Case 2: d_model multiple of 128 -> exercises the flattened lane-dense path.
    S2, B2, D2 = 16, 2, 128
    x2 = jax.random.normal(jax.random.PRNGKey(0), (S2, B2, D2), dtype=jnp.float32)
    pe_big = _build_pe(D2, max_len=32, dtype=jnp.float32)
    out2 = jax.block_until_ready(positional_encoding(x2, pe_big))
    ref2 = x2 + pe_big[:S2]
    assert out2.shape == (S2, B2, D2)
    assert jnp.allclose(out2, ref2, atol=1e-6), "mismatch vs reference (flat path)"

    print("KERNEL_OK")
</pallas_src>

<mosaic_0001>
module attributes {stable_mosaic.version = 11 : i64} {
  func.func @_pos_enc_kernel_3d(%arg0: i32, %arg1: i32, %arg2: memref<8x2x32xf32, #tpu.memory_space<vmem>>, %arg3: memref<8x1x32xf32, #tpu.memory_space<vmem>>, %arg4: memref<8x2x32xf32, #tpu.memory_space<vmem>>) attributes {dimension_semantics = [#tpu.dimension_semantics<parallel>, #tpu.dimension_semantics<parallel>], iteration_bounds = array<i64: 1, 1>, scalar_prefetch = 0 : i64, scratch_operands = 0 : i64, tpu.core_type = #tpu.core_type<tc>, window_params = [{transform_indices = @transform_0, window_bounds = array<i64: 8, 2, 32>}, {transform_indices = @transform_1, window_bounds = array<i64: 8, 1, 32>}, {transform_indices = @transform_2, window_bounds = array<i64: 8, 2, 32>}]} {
    %c0 = arith.constant 0 : index
    %c0_0 = arith.constant 0 : index
    %c0_1 = arith.constant 0 : index
    %0 = vector.load %arg2[%c0, %c0_0, %c0_1] : memref<8x2x32xf32, #tpu.memory_space<vmem>>, vector<8x2x32xf32>
    %c0_2 = arith.constant 0 : index
    %c0_3 = arith.constant 0 : index
    %c0_4 = arith.constant 0 : index
    %1 = vector.load %arg3[%c0_2, %c0_3, %c0_4] : memref<8x1x32xf32, #tpu.memory_space<vmem>>, vector<8x1x32xf32>
    %2 = vector.broadcast %1 : vector<8x1x32xf32> to vector<8x2x32xf32>
    %3 = arith.addf %0, %2 : vector<8x2x32xf32>
    %c0_5 = arith.constant 0 : index
    %c0_6 = arith.constant 0 : index
    %c0_7 = arith.constant 0 : index
    %4 = vector.load %arg4[%c0_5, %c0_6, %c0_7] : memref<8x2x32xf32, #tpu.memory_space<vmem>>, vector<8x2x32xf32>
    tpu.vector_store %arg4[%c0_5, %c0_6, %c0_7], %3 {strides = array<i32>} : memref<8x2x32xf32, #tpu.memory_space<vmem>>, vector<8x2x32xf32>,
    return
  }
  func.func @transform_0(%arg0: i32, %arg1: i32) -> (i32, i32, i32) {
    %c0_i32 = arith.constant 0 : i32
    %c0_i32_0 = arith.constant 0 : i32
    return %arg0, %c0_i32, %arg1 : i32, i32, i32
  }
  func.func @transform_1(%arg0: i32, %arg1: i32) -> (i32, i32, i32) {
    %c0_i32 = arith.constant 0 : i32
    %c0_i32_0 = arith.constant 0 : i32
    return %arg0, %c0_i32, %arg1 : i32, i32, i32
  }
  func.func @transform_2(%arg0: i32, %arg1: i32) -> (i32, i32, i32) {
    %c0_i32 = arith.constant 0 : i32
    %c0_i32_0 = arith.constant 0 : i32
    return %arg0, %c0_i32, %arg1 : i32, i32, i32
  }
}

</mosaic_0001>

<llo_original>
// kernel: tpu_custom_call.1
$region0: #{tpu_custom_call.1}
  #allocation0 [shape = 'u32[]', space=smem, size = 0x4, offset = 0x4, fixed_abs, tag = 'smem constant byte address 0x4 - core index']
  #allocation1 [shape = 'u32[144,128]{1,0:T(1,128)}', space=vmem, size = 0x12000, scoped, tag = 'internal scratch']
  %s0 = inlined_call_operand.vmem [shape: f32[8,2,32], index: 0, kind: input, shape index: {}]
  %s1 = inlined_call_operand.vmem [shape: f32[64,1,32], index: 1, kind: input, shape index: {}]
  %s2 = inlined_call_operand.hbm [shape: f32[8,2,32], index: 2, kind: output, shape index: {}]
  %s3 = sld [smem:[#allocation0]]
  $region18: #{tpu_custom_call.1} parent=0
    _
  %s5 = ssub.s32 1, %s3
  %s6 = scalar_select 0, %s5, %s3
  $region1: #{tpu_custom_call.1} parent=0
    #allocation2 [shape = 'u8[8192]{0}', space=vmem, size = 0x2000, scoped, tag = 'output window, operand 0, single buffered']
    #allocation3 [shape = 's32[1]{0}', space=sflag, size = 0x4, scoped, tag = 'scoped memory for tpu_custom_call.1']
    %7 = vsyncpa [#allocation3], 0
    // Predicated region
    $region2: #{tpu_custom_call.1} parent=1 // pred_check
      _
    $region3: #{tpu_custom_call.1} parent=1 // pred_check_branch
      %9 = sbr.rel (0) target = $region5
    $region4: #{tpu_custom_call.1} parent=1 // pred_region
      _
    $region5: #{tpu_custom_call.1} parent=1 // pred_fallthru
      _
    // Predicated region
    $region6: #{tpu_custom_call.1} parent=1 // pred_check
      _
    $region7: #{tpu_custom_call.1} parent=1 // pred_check_branch
      %11 = sbr.rel (0) target = $region9
    $region8: #{tpu_custom_call.1} parent=1 // pred_region
      _
    $region9: #{tpu_custom_call.1} parent=1 // pred_fallthru
      _
    %v12 = vld [vmem:[%s0] sm:$0x3]
    %v13 = vld [vmem:[%s0 + $0x2] sm:$0x3]
    %v14 = vld [vmem:[%s0 + $0x4] sm:$0x3]
    %v15 = vld [vmem:[%s0 + $0x6] sm:$0x3]
    %v16 = vld [vmem:[%s0 + $0x8] sm:$0x3]
    %v17 = vld [vmem:[%s0 + $0xa] sm:$0x3]
    %v18 = vld [vmem:[%s0 + $0xc] sm:$0x3]
    %v19 = vld [vmem:[%s0 + $0xe] sm:$0x3]
    %v20 = vld [vmem:[%s1] sm:$0x1]
    %v21 = vld [vmem:[%s1 + $0x1] sm:$0x1]
    %v22 = vld [vmem:[%s1 + $0x2] sm:$0x1]
    %v23 = vld [vmem:[%s1 + $0x3] sm:$0x1]
    %v24 = vld [vmem:[%s1 + $0x4] sm:$0x1]
    %v25 = vld [vmem:[%s1 + $0x5] sm:$0x1]
    %v26 = vld [vmem:[%s1 + $0x6] sm:$0x1]
    %v27 = vld [vmem:[%s1 + $0x7] sm:$0x1]
    %v36 = vlaneseq
    %v37 = vshrl.u32 %v36, 7
    %v38 = vsub.s32 0, %v37
    %v39 = vrot.slane %v20, %v38
    %v40 = vlaneseq
    %v41 = vshrl.u32 %v40, 7
    %v42 = vsub.s32 0, %v41
    %v43 = vrot.slane %v21, %v42
    %v44 = vlaneseq
    %v45 = vshrl.u32 %v44, 7
    %v46 = vsub.s32 0, %v45
    %v47 = vrot.slane %v22, %v46
    %v48 = vlaneseq
    %v49 = vshrl.u32 %v48, 7
    %v50 = vsub.s32 0, %v49
    %v51 = vrot.slane %v23, %v50
    %v52 = vlaneseq
    %v53 = vshrl.u32 %v52, 7
    %v54 = vsub.s32 0, %v53
    %v55 = vrot.slane %v24, %v54
    %v56 = vlaneseq
    %v57 = vshrl.u32 %v56, 7
    %v58 = vsub.s32 0, %v57
    %v59 = vrot.slane %v25, %v58
    %v60 = vlaneseq
    %v61 = vshrl.u32 %v60, 7
    %v62 = vsub.s32 0, %v61
    %v63 = vrot.slane %v26, %v62
    %v64 = vlaneseq
    %v65 = vshrl.u32 %v64, 7
    %v66 = vsub.s32 0, %v65
    %v67 = vrot.slane %v27, %v66
    %v76 = vadd.f32 %v12, %v39
    %v77 = vadd.f32 %v13, %v43
    %v78 = vadd.f32 %v14, %v47
    %v79 = vadd.f32 %v15, %v51
    %v80 = vadd.f32 %v16, %v55
    %v81 = vadd.f32 %v17, %v59
    %v82 = vadd.f32 %v18, %v63
    %v83 = vadd.f32 %v19, %v67
    %vm84 = vcmask 254976
    %85 = vst.msk [vmem:[#allocation2] sm:$0x3] %vm84, %v76
    %86 = vst.msk [vmem:[#allocation2 + $0x2] sm:$0x3] %vm84, %v77
    %87 = vst.msk [vmem:[#allocation2 + $0x4] sm:$0x3] %vm84, %v78
    %88 = vst.msk [vmem:[#allocation2 + $0x6] sm:$0x3] %vm84, %v79
    %89 = vst.msk [vmem:[#allocation2 + $0x8] sm:$0x3] %vm84, %v80
    %90 = vst.msk [vmem:[#allocation2 + $0xa] sm:$0x3] %vm84, %v81
    %91 = vst.msk [vmem:[#allocation2 + $0xc] sm:$0x3] %vm84, %v82
    %92 = vst.msk [vmem:[#allocation2 + $0xe] sm:$0x3] %vm84, %v83
    // Predicated region
    $region10: #{tpu_custom_call.1} parent=1 // pred_check
      _
    $region11: #{tpu_custom_call.1} parent=1 // pred_check_branch
      %94 = sbr.rel (0) target = $region13
    $region12: #{tpu_custom_call.1} parent=1 // pred_region
      %s96 = ssub.s32 256, 256
      %97 = vsyncadd [#allocation3], %s96
      %s98 = sshll.u32 [#allocation2], 4
      %s99 = int_to_ptr.vmem [resolvable:$true] %s98
      %104 = dma.vmem_to_hbm [thread:$0]  %s99, 256, %s2, [#allocation3], 32, 32, 2
    $region13: #{tpu_custom_call.1} parent=1 // pred_fallthru
      _
    // Predicated region
    $region14: #{tpu_custom_call.1} parent=1 // pred_check
      _
    $region15: #{tpu_custom_call.1} parent=1 // pred_check_branch
      %106 = sbr.rel (0) target = $region17
    $region16: #{tpu_custom_call.1} parent=1 // pred_region
      %107 = dma.done [#allocation3], 256
    $region17: #{tpu_custom_call.1} parent=1 // pred_fallthru
      _
    %108 = vsyncpa [#allocation3], 1

</llo_original>
